<compile_context>
chip_gen: v5e
topology: v5e:2x2
jax: 0.10.0
libtpu: 0.0.40
codegen_flags: <defaults>
</compile_context>

<pallas_src>
import math

import jax
import jax.numpy as jnp
from jax.experimental import pallas as pl
from jax.experimental.pallas import tpu as pltpu


def _round_up(x, m):
    return (x + m - 1) // m * m


# ---------------------------------------------------------------------------
# Kernel 1: scores = (X @ w_hat) + mask   with w_hat = scorer / ||scorer||
# ---------------------------------------------------------------------------
def _score_kernel(emb_ref, w_ref, mask_ref, out_ref):
    # emb_ref : (TILE_N, F)  current node tile
    # w_ref   : (8, F)       normalized scorer replicated on 8 sublanes
    #                        (keeps the MXU lhs at native sublane granularity)
    # mask_ref: (1, TILE_N)  lane-dense mask slice
    # out_ref : (1, TILE_N)  lane-dense score slice
    s = jax.lax.dot_general(
        w_ref[...], emb_ref[...],
        dimension_numbers=(((1,), (1,)), ((), ())),   # (8,F) @ (TILE_N,F)^T
        preferred_element_type=jnp.float32)           # -> (8, TILE_N), rows equal
    out_ref[...] = s[0:1, :] + mask_ref[...]


def _choose_tile_n(n, f):
    # Double-buffered (tile_n, F) f32 input tiles must stay well under the
    # smallest VMEM budgets (16 MiB default scoped on v5e, 64 MiB physical per
    # TensorCore on v7x): cap one buffer at ~4 MiB, tile_n in [128, 1024].
    per_buffer_bytes = 4 * 1024 * 1024
    t = per_buffer_bytes // max(4 * f, 1)
    t = max(128, min(1024, (t // 128) * 128))
    return min(t, _round_up(n, 128))


def compute_scores(node_embs, w_hat_row, mask_row):
    n, f = node_embs.shape
    tile_n = _choose_tile_n(n, f)
    n_pad = _round_up(n, tile_n)
    if n_pad != n:
        node_embs = jnp.pad(node_embs, ((0, n_pad - n), (0, 0)))
        mask_row = jnp.pad(mask_row, ((0, 0), (0, n_pad - n)))

    # replicate the (1, F) normalized scorer onto 8 sublanes (tiny, resident)
    w_hat_8 = jnp.broadcast_to(w_hat_row, (8, f))

    scores = pl.pallas_call(
        _score_kernel,
        out_shape=jax.ShapeDtypeStruct((1, n_pad), jnp.float32),
        grid_spec=pltpu.PrefetchScalarGridSpec(
            num_scalar_prefetch=0,
            grid=(n_pad // tile_n,),
            in_specs=[
                pl.BlockSpec((tile_n, f), lambda i: (i, 0)),   # node tile
                pl.BlockSpec((8, f), lambda i: (0, 0)),        # scorer (resident)
                pl.BlockSpec((1, tile_n), lambda i: (0, i)),   # mask (lane-dense)
            ],
            out_specs=pl.BlockSpec((1, tile_n), lambda i: (0, i)),
        ),
        compiler_params=pltpu.CompilerParams(
            dimension_semantics=("parallel",)),
    )(node_embs, w_hat_8, mask_row)
    return scores.reshape(-1)[:n]


# ---------------------------------------------------------------------------
# Kernel 2: batched row gather + scale by precomputed tanh(score)
# ---------------------------------------------------------------------------
_GATHER_ROWS = 8   # rows gathered per grid step (full sublane utilization)


def _gather_kernel(idx_ref, scale_ref, emb_hbm_ref, out_ref, buf_ref, sems):
    # idx_ref    : (k_pad,) int32 in SMEM (scalar prefetch)
    # scale_ref  : (B, 1)   tanh(score) for this step's rows
    # emb_hbm_ref: (N, F)   node embeddings left in HBM (pl.ANY)
    # out_ref    : (B, F)
    # buf_ref    : (B, F)   VMEM scratch;  sems: (B,) DMA semaphores
    i = pl.program_id(0)
    b_rows = buf_ref.shape[0]
    base = i * b_rows
    copies = []
    for b in range(b_rows):                       # static unroll: B DMAs in flight
        cp = pltpu.make_async_copy(
            emb_hbm_ref.at[idx_ref[base + b]], buf_ref.at[b], sems.at[b])
        cp.start()
        copies.append(cp)
    for cp in copies:
        cp.wait()
    out_ref[...] = buf_ref[...] * scale_ref[...]


def gather_scaled(node_embs, topk_indices, scales):
    n, f = node_embs.shape
    k = topk_indices.shape[0]
    b_rows = _GATHER_ROWS
    k_pad = _round_up(k, b_rows)
    idx = topk_indices.astype(jnp.int32)
    if k_pad != k:
        idx = jnp.concatenate(
            [idx, jnp.full((k_pad - k,), idx[-1], dtype=jnp.int32)])
        scales = jnp.concatenate(
            [scales, jnp.full((k_pad - k,), scales[-1], dtype=scales.dtype)])
    scales_col = scales.reshape(k_pad, 1).astype(jnp.float32)

    out = pl.pallas_call(
        _gather_kernel,
        out_shape=jax.ShapeDtypeStruct((k_pad, f), jnp.float32),
        grid_spec=pltpu.PrefetchScalarGridSpec(
            num_scalar_prefetch=1,
            grid=(k_pad // b_rows,),
            in_specs=[
                pl.BlockSpec((b_rows, 1), lambda i, idx_ref: (i, 0)),  # tanh scales
                pl.BlockSpec(memory_space=pl.ANY),                     # embs in HBM
            ],
            out_specs=pl.BlockSpec((b_rows, f), lambda i, idx_ref: (i, 0)),
            scratch_shapes=[
                pltpu.VMEM((b_rows, f), jnp.float32),
                pltpu.SemaphoreType.DMA((b_rows,)),
            ],
        ),
        compiler_params=pltpu.CompilerParams(
            dimension_semantics=("parallel",)),
    )(idx, scales_col, node_embs)
    return out[:k]


# ---------------------------------------------------------------------------
# Full TopK forward
# ---------------------------------------------------------------------------
def topk_forward(node_embs, mask, scorer, k):
    node_embs = node_embs.astype(jnp.float32)
    n, f = node_embs.shape

    # hoisted normalization (otherwise redone every grid tile inside the kernel)
    w = scorer.astype(jnp.float32).reshape(-1)
    w_hat_row = (w * jax.lax.rsqrt(jnp.sum(w * w))).reshape(1, f)
    mask_row = mask.astype(jnp.float32).reshape(1, n)

    scores = compute_scores(node_embs, w_hat_row, mask_row)        # (N,)

    # TODO(synk): top-k selection + "-inf filter / pad with last valid" stays in
    # plain JAX — there is no clean Pallas TPU sort/top-k primitive.
    vals, idx = jax.lax.top_k(scores, k)
    valid = vals > -jnp.inf
    count = jnp.sum(valid.astype(jnp.int32))
    last_pos = jnp.maximum(count - 1, 0)
    in_range = jnp.arange(k) < count
    padded_idx = jnp.where(in_range, idx, idx[last_pos]).astype(jnp.int32)
    padded_val = jnp.where(in_range, vals, vals[last_pos])
    scales = jnp.tanh(padded_val)                                  # (k,) hoisted out of the gather kernel

    if f >= 128 and k >= _GATHER_ROWS:
        out = gather_scaled(node_embs, padded_idx, scales)         # (k, F)
    else:
        # tiny problems: kernel-launch + per-row DMA overhead would dominate
        out = node_embs[padded_idx] * scales[:, None]
    return out.T                                                   # (F, k)


if __name__ == "__main__":
    N, F, K = 2048, 128, 16

    key = jax.random.PRNGKey(0)
    k_emb, k_scorer = jax.random.split(key)

    node_embs = jax.random.normal(k_emb, (N, F), dtype=jnp.float32)

    # deterministic parameter init mirroring reset_param: U(-1/sqrt(F), 1/sqrt(F))
    stdv = 1.0 / math.sqrt(F)
    scorer = jax.random.uniform(
        k_scorer, (F, 1), minval=-stdv, maxval=stdv, dtype=jnp.float32)

    # mask: last 512 nodes masked out with -inf
    mask = jnp.zeros((N, 1), dtype=jnp.float32)
    mask = mask.at[-512:, 0].set(-jnp.inf)

    out = topk_forward(node_embs, mask, scorer, K)
    out = jax.block_until_ready(out)
    assert out.shape == (F, K), out.shape
    assert bool(jnp.all(jnp.isfinite(out))), "non-finite output"

    # --- cross-check kernels against a plain-JAX reference -----------------
    w = scorer.reshape(-1)
    w_hat = w * jax.lax.rsqrt(jnp.sum(w * w))
    ref_scores = jnp.sum(node_embs * w_hat[None, :], axis=-1) + mask.reshape(-1)
    pl_scores = compute_scores(node_embs, w_hat.reshape(1, F),
                               mask.reshape(1, N))
    assert bool(jnp.allclose(pl_scores, ref_scores, rtol=1e-4, atol=1e-4)), \
        "score kernel mismatch"

    vals, idx = jax.lax.top_k(pl_scores, K)
    ref_out = (node_embs[idx] * jnp.tanh(vals)[:, None]).T
    assert bool(jnp.allclose(out, ref_out, rtol=1e-5, atol=1e-5)), \
        "gather kernel mismatch"

    print("KERNEL_OK")
</pallas_src>

<mosaic_0001>
module attributes {stable_mosaic.version = 11 : i64} {
  func.func @_score_kernel(%arg0: i32, %arg1: memref<1024x128xf32, #tpu.memory_space<vmem>>, %arg2: memref<8x128xf32, #tpu.memory_space<vmem>>, %arg3: memref<1x1024xf32, #tpu.memory_space<vmem>>, %arg4: memref<1x1024xf32, #tpu.memory_space<vmem>>) attributes {dimension_semantics = [#tpu.dimension_semantics<parallel>], iteration_bounds = array<i64: 2>, scalar_prefetch = 0 : i64, scratch_operands = 0 : i64, tpu.core_type = #tpu.core_type<tc>, window_params = [{transform_indices = @transform_0, window_bounds = array<i64: 1024, 128>}, {pipeline_mode = #tpu.pipeline_mode<synchronous>, transform_indices = @transform_1, window_bounds = array<i64: 8, 128>}, {transform_indices = @transform_2, window_bounds = array<i64: 1, 1024>}, {transform_indices = @transform_3, window_bounds = array<i64: 1, 1024>}]} {
    %c0 = arith.constant 0 : index
    %c0_0 = arith.constant 0 : index
    %0 = vector.load %arg2[%c0, %c0_0] : memref<8x128xf32, #tpu.memory_space<vmem>>, vector<8x128xf32>
    %c0_1 = arith.constant 0 : index
    %c0_2 = arith.constant 0 : index
    %1 = vector.load %arg1[%c0_1, %c0_2] : memref<1024x128xf32, #tpu.memory_space<vmem>>, vector<1024x128xf32>
    %cst = arith.constant dense<0.000000e+00> : vector<8x1024xf32>
    %2 = tpu.matmul %0, %1, %cst {dimension_numbers = #tpu.dot_dimension_numbers<[1], [1], [0], [0], [0, 0, 1, 0], [], []>} : vector<8x128xf32>, vector<1024x128xf32>, vector<8x1024xf32> -> vector<8x1024xf32>
    %3 = vector.extract_strided_slice %2 {offsets = [0, 0], sizes = [1, 1024], strides = [1, 1]} : vector<8x1024xf32> to vector<1x1024xf32>
    %c0_3 = arith.constant 0 : index
    %c0_4 = arith.constant 0 : index
    %4 = vector.load %arg3[%c0_3, %c0_4] : memref<1x1024xf32, #tpu.memory_space<vmem>>, vector<1x1024xf32>
    %5 = arith.addf %3, %4 : vector<1x1024xf32>
    %c0_5 = arith.constant 0 : index
    %c0_6 = arith.constant 0 : index
    %6 = vector.load %arg4[%c0_5, %c0_6] : memref<1x1024xf32, #tpu.memory_space<vmem>>, vector<1x1024xf32>
    tpu.vector_store %arg4[%c0_5, %c0_6], %5 {strides = array<i32>} : memref<1x1024xf32, #tpu.memory_space<vmem>>, vector<1x1024xf32>,
    return
  }
  func.func @transform_0(%arg0: i32) -> (i32, i32) {
    %c0_i32 = arith.constant 0 : i32
    %c0_i32_0 = arith.constant 0 : i32
    return %arg0, %c0_i32 : i32, i32
  }
  func.func @transform_1(%arg0: i32) -> (i32, i32) {
    %c0_i32 = arith.constant 0 : i32
    %c0_i32_0 = arith.constant 0 : i32
    %c0_i32_1 = arith.constant 0 : i32
    return %c0_i32, %c0_i32_0 : i32, i32
  }
  func.func @transform_2(%arg0: i32) -> (i32, i32) {
    %c0_i32 = arith.constant 0 : i32
    %c0_i32_0 = arith.constant 0 : i32
    return %c0_i32, %arg0 : i32, i32
  }
  func.func @transform_3(%arg0: i32) -> (i32, i32) {
    %c0_i32 = arith.constant 0 : i32
    %c0_i32_0 = arith.constant 0 : i32
    return %c0_i32, %arg0 : i32, i32
  }
}

</mosaic_0001>

<llo_original>
// kernel: tpu_custom_call.1
$region0: #{tpu_custom_call.1}
  #allocation0 [shape = 'u32[]', space=smem, size = 0x4, offset = 0x4, fixed_abs, tag = 'smem constant byte address 0x4 - core index']
  #allocation1 [shape = 'u32[72,128]{1,0:T(1,128)}', space=vmem, size = 0x9000, scoped, tag = 'internal scratch']
  %s0 = inlined_call_operand.hbm [shape: f32[2048,128], index: 0, kind: input, shape index: {}]
  %s1 = inlined_call_operand.hbm [shape: f32[8,128], index: 1, kind: input, shape index: {}]
  %s2 = inlined_call_operand.hbm [shape: f32[1,2048], index: 2, kind: input, shape index: {}]
  %s3 = inlined_call_operand.hbm [shape: f32[1,2048], index: 3, kind: output, shape index: {}]
  %s4 = sld [smem:[#allocation0]]
  $region57: #{tpu_custom_call.1} parent=0
    _
  %s6 = ssub.s32 1, %s4
  %s7 = scalar_select 0, %s6, %s4
  $region1: #{tpu_custom_call.1} parent=0
    #allocation2 [shape = 'u8[1048576]{0}', space=vmem, size = 0x100000, scoped, tag = 'input window, operand 0']
    #allocation3 [shape = 's32[2]{0}', space=sflag, size = 0x8, scoped, tag = 'scoped memory for tpu_custom_call.1']
    #allocation4 [shape = 's32[2]{0}', space=sflag, size = 0x8, scoped, tag = 'scoped memory for tpu_custom_call.1']
    #allocation5 [shape = 'u8[4096]{0}', space=vmem, size = 0x1000, scoped, tag = 'input window, operand 1, single buffered']
    #allocation6 [shape = 's32[1]{0}', space=sflag, size = 0x4, scoped, tag = 'scoped memory for tpu_custom_call.1']
    #allocation7 [shape = 'u8[8192]{0}', space=vmem, size = 0x2000, scoped, tag = 'input window, operand 2']
    #allocation8 [shape = 'u8[8192]{0}', space=vmem, size = 0x2000, scoped, tag = 'output window, operand 0']
    %8 = vsyncpa [#allocation3], 0
    %s9 = scalar_lea.sflag [#allocation3], 1
    %10 = vsyncpa %s9, 0
    %11 = vsyncpa [#allocation6], 0
    %12 = vsyncpa [#allocation4], 0
    %s13 = scalar_lea.sflag [#allocation4], 1
    %14 = vsyncpa %s13, 0
    loop: start=0, step=1, limit=4
    $region2: #{tpu_custom_call.1} parent=1 // loop_pre_header
      _
    $region3: #{tpu_custom_call.1} parent=1 // loop_header
      %s16 = sphi 0, %s20
      %p17 = scmp.ge.s32.totalorder %s16, 4
      %s26 = sphi 0, %s28
      %s29 = sphi 0, %s26
      %s30 = sphi 0, %s29
      %s46 = sphi 0, %s30
      %s50 = sphi 0, %s50
      %s52 = sphi 0, %s50
      %s53 = sphi 0, %s52
      %s67 = sphi 0, %s53
      %s73 = sphi 0, %s75
      %s76 = sphi 0, %s73
      %s77 = sphi 0, %s76
      %s93 = sphi 0, %s77
      %s99 = sphi 0, %s101
      %s102 = sphi 0, %s99
      %s103 = sphi 0, %s102
      %s119 = sphi 0, %s103
    $region4: #{tpu_custom_call.1} parent=1 // loop_header_branch
      %19 = sbr.rel (%p17) target = $region8
    $region5: #{tpu_custom_call.1} parent=1 // loop_body
      %s21 = ssub.s32 %s16, 1
      %s22 = ssub.s32 %s16, 2
      %s23 = sadd.s32 %s16, 1
      %s24 = ssub.s32 %s16, %s23
      %p25 = scmp.eq.s32.totalorder %s24, 0
      %s27 = sadd.s32 %s26, 1
      %s28 = scalar_select %p25, %s26, %s27
      %p31 = pneg %p25
      %p32 = scmp.eq.s32.totalorder %s16, 1
      %p33 = por %p31, %p32
      %p34 = scmp.ne.s32.totalorder %s26, %s29
      %p35 = scmp.eq.s32.totalorder %s16, 0
      %p36 = por %p34, %p35
      %p37 = scmp.ne.s32.totalorder %s26, %s29
      %p38 = scmp.eq.s32.totalorder %s21, 1
      %p39 = por %p37, %p38
      %p40 = scmp.ne.s32.totalorder %s29, %s30
      %p41 = scmp.eq.s32.totalorder %s21, 0
      %p42 = por %p40, %p41
      %p43 = scmp.ne.s32.totalorder %s29, %s30
      %p44 = scmp.eq.s32.totalorder %s22, 1
      %p45 = por %p43, %p44
      %p47 = scmp.ne.s32.totalorder %s30, %s46
      %p48 = scmp.eq.s32.totalorder %s22, 0
      %p49 = por %p47, %p48
      %s51 = sadd.s32 %s50, 1
      %p54 = scmp.eq.s32.totalorder %s16, 1
      %p55 = scmp.ne.s32.totalorder %s50, %s52
      %p56 = scmp.eq.s32.totalorder %s16, 0
      %p57 = por %p55, %p56
      %p58 = scmp.ne.s32.totalorder %s50, %s52
      %p59 = scmp.eq.s32.totalorder %s21, 1
      %p60 = por %p58, %p59
      %p61 = scmp.ne.s32.totalorder %s52, %s53
      %p62 = scmp.eq.s32.totalorder %s21, 0
      %p63 = por %p61, %p62
      %p64 = scmp.ne.s32.totalorder %s52, %s53
      %p65 = scmp.eq.s32.totalorder %s22, 1
      %p66 = por %p64, %p65
      %p68 = scmp.ne.s32.totalorder %s53, %s67
      %p69 = scmp.eq.s32.totalorder %s22, 0
      %p70 = por %p68, %p69
      %s71 = ssub.s32 %s16, %s23
      %p72 = scmp.eq.s32.totalorder %s71, 0
      %s74 = sadd.s32 %s73, 1
      %s75 = scalar_select %p72, %s73, %s74
      %p78 = pneg %p72
      %p79 = scmp.eq.s32.totalorder %s16, 1
      %p80 = por %p78, %p79
      %p81 = scmp.ne.s32.totalorder %s73, %s76
      %p82 = scmp.eq.s32.totalorder %s16, 0
      %p83 = por %p81, %p82
      %p84 = scmp.ne.s32.totalorder %s73, %s76
      %p85 = scmp.eq.s32.totalorder %s21, 1
      %p86 = por %p84, %p85
      %p87 = scmp.ne.s32.totalorder %s76, %s77
      %p88 = scmp.eq.s32.totalorder %s21, 0
      %p89 = por %p87, %p88
      %p90 = scmp.ne.s32.totalorder %s76, %s77
      %p91 = scmp.eq.s32.totalorder %s22, 1
      %p92 = por %p90, %p91
      %p94 = scmp.ne.s32.totalorder %s77, %s93
      %p95 = scmp.eq.s32.totalorder %s22, 0
      %p96 = por %p94, %p95
      %s97 = ssub.s32 %s16, %s23
      %p98 = scmp.eq.s32.totalorder %s97, 0
      %s100 = sadd.s32 %s99, 1
      %s101 = scalar_select %p98, %s99, %s100
      %p104 = pneg %p98
      %p105 = scmp.eq.s32.totalorder %s16, 1
      %p106 = por %p104, %p105
      %p107 = scmp.ne.s32.totalorder %s99, %s102
      %p108 = scmp.eq.s32.totalorder %s16, 0
      %p109 = por %p107, %p108
      %p110 = scmp.ne.s32.totalorder %s99, %s102
      %p111 = scmp.eq.s32.totalorder %s21, 1
      %p112 = por %p110, %p111
      %p113 = scmp.ne.s32.totalorder %s102, %s103
      %p114 = scmp.eq.s32.totalorder %s21, 0
      %p115 = por %p113, %p114
      %p116 = scmp.ne.s32.totalorder %s102, %s103
      %p117 = scmp.eq.s32.totalorder %s22, 1
      %p118 = por %p116, %p117
      %p120 = scmp.ne.s32.totalorder %s103, %s119
      %p121 = scmp.eq.s32.totalorder %s22, 0
      %p122 = por %p120, %p121
      %p123 = scmp.le.s32.totalorder 1, %s16
      %p124 = scmp.lt.s32.totalorder %s16, 3
      %p125 = pnand %p123, %p124
      %p126 = pneg %p125
      // Predicated region
      $region9: #{tpu_custom_call.1} parent=5 // pred_check
        _
      $region10: #{tpu_custom_call.1} parent=5 // pred_check_branch
        %128 = sbr.rel (%p125) target = $region12
      $region11: #{tpu_custom_call.1} parent=5 // pred_region
        %s129 = ssub.s32 %s16, 1
        // Predicated region
        $region13: #{tpu_custom_call.1} parent=11 // pred_check
          %p130 = pneg %p63
        $region14: #{tpu_custom_call.1} parent=11 // pred_check_branch
          %132 = sbr.rel (%p130) target = $region16
        $region15: #{tpu_custom_call.1} parent=11 // pred_region
          %134 = vsyncadd [#allocation6], 0
          %s136 = sshll.u32 %s1, 4
          %s137 = int_to_ptr.hbm [resolvable:$true] %s136
          %s138 = sshll.u32 [#allocation5], 4
          %s139 = int_to_ptr.vmem [resolvable:$true] %s138
          %141 = dma.hbm_to_vmem [thread:$0]  %s137, 128, %s139, [#allocation6]
        $region16: #{tpu_custom_call.1} parent=11 // pred_fallthru
          _
      $region12: #{tpu_custom_call.1} parent=5 // pred_fallthru
        _
      %p142 = scmp.lt.s32.totalorder %s16, 2
      // Predicated region
      $region17: #{tpu_custom_call.1} parent=5 // pred_check
        %p143 = pneg %p142
      $region18: #{tpu_custom_call.1} parent=5 // pred_check_branch
        %145 = sbr.rel (%p143) target = $region20
      $region19: #{tpu_custom_call.1} parent=5 // pred_region
        // Predicated region
        $region21: #{tpu_custom_call.1} parent=19 // pred_check
          %p146 = pneg %p36
        $region22: #{tpu_custom_call.1} parent=19 // pred_check_branch
          %148 = sbr.rel (%p146) target = $region24
        $region23: #{tpu_custom_call.1} parent=19 // pred_region
          %s149 = sand.u32 %s16, 1
          %s150 = scalar_lea.sflag [#allocation3], %s149
          %s151 = sand.u32 %s26, 1
          %s152 = smul.addr %s151, 1024
          %s153 = scalar_lea.vmem [#allocation2], %s152
          %s154 = smul.u32 128, %s16
          %156 = vsyncadd %s150, 0
          %s157 = smul.addr %s154, 8
          %s158 = scalar_lea.hbm %s0, %s157
          %s159 = sshll.u32 %s158, 4
          %s160 = int_to_ptr.hbm [resolvable:$true] %s159
          %s161 = sshll.u32 %s153, 4
          %s162 = int_to_ptr.vmem [resolvable:$true] %s161
          %167 = dma.hbm_to_vmem [thread:$0]  %s160, 16384, %s162, %s150, 128, 128, 8
        $region24: #{tpu_custom_call.1} parent=19 // pred_fallthru
          _
        // Predicated region
        $region25: #{tpu_custom_call.1} parent=19 // pred_check
          %p168 = pneg %p83
        $region26: #{tpu_custom_call.1} parent=19 // pred_check_branch
          %170 = sbr.rel (%p168) target = $region28
        $region27: #{tpu_custom_call.1} parent=19 // pred_region
          %s171 = sand.u32 %s16, 1
          %s172 = scalar_lea.sflag [#allocation3], %s171
          %s173 = sand.u32 %s73, 1
          %s174 = smul.addr %s173, 8
          %s175 = scalar_lea.vmem [#allocation7], %s174
          %s176 = smul.u32 8, %s16
          %178 = vsyncadd %s172, 0
          %s179 = scalar_lea.hbm %s2, %s176
          %s181 = sshll.u32 %s179, 4
          %s182 = int_to_ptr.hbm [resolvable:$true] %s181
          %s183 = sshll.u32 %s175, 4
          %s184 = int_to_ptr.vmem [resolvable:$true] %s183
          %186 = dma.hbm_to_vmem [thread:$0]  %s182, 128, %s184, %s172
        $region28: #{tpu_custom_call.1} parent=19 // pred_fallthru
          _
      $region20: #{tpu_custom_call.1} parent=5 // pred_fallthru
        _
      %p187 = scmp.le.s32.totalorder 1, %s16
      %p188 = scmp.lt.s32.totalorder %s16, 3
      %p189 = pnand %p187, %p188
      %p190 = pneg %p189
      // Predicated region
      $region29: #{tpu_custom_call.1} parent=5 // pred_check
        _
      $region30: #{tpu_custom_call.1} parent=5 // pred_check_branch
        %192 = sbr.rel (%p189) target = $region32
      $region31: #{tpu_custom_call.1} parent=5 // pred_region
        %s193 = ssub.s32 %s16, 1
        %s194 = sand.u32 %s21, 1
        %s195 = scalar_lea.sflag [#allocation3], %s194
        %s196 = sand.u32 %s29, 1
        %s197 = smul.addr %s196, 1024
        %s198 = scalar_lea.vmem [#allocation2], %s197
        // Predicated region
        $region33: #{tpu_custom_call.1} parent=31 // pred_check
          %p199 = pneg %p42
        $region34: #{tpu_custom_call.1} parent=31 // pred_check_branch
          %201 = sbr.rel (%p199) target = $region36
        $region35: #{tpu_custom_call.1} parent=31 // pred_region
          %203 = dma.done %s195, 16384
        $region36: #{tpu_custom_call.1} parent=31 // pred_fallthru
          _
        // Predicated region
        $region37: #{tpu_custom_call.1} parent=31 // pred_check
          %p204 = pneg %p63
        $region38: #{tpu_custom_call.1} parent=31 // pred_check_branch
          %206 = sbr.rel (%p204) target = $region40
        $region39: #{tpu_custom_call.1} parent=31 // pred_region
          %208 = dma.done [#allocation6], 128
        $region40: #{tpu_custom_call.1} parent=31 // pred_fallthru
          _
        %s209 = sand.u32 %s21, 1
        %s210 = scalar_lea.sflag [#allocation3], %s209
        %s211 = sand.u32 %s76, 1
        %s212 = smul.addr %s211, 8
        %s213 = scalar_lea.vmem [#allocation7], %s212
        // Predicated region
        $region41: #{tpu_custom_call.1} parent=31 // pred_check
          %p214 = pneg %p89
        $region42: #{tpu_custom_call.1} parent=31 // pred_check_branch
          %216 = sbr.rel (%p214) target = $region44
        $region43: #{tpu_custom_call.1} parent=31 // pred_region
          %218 = dma.done %s210, 128
        $region44: #{tpu_custom_call.1} parent=31 // pred_fallthru
          _
        %s219 = sand.u32 %s21, 1
        %s220 = scalar_lea.sflag [#allocation3], %s219
        %s221 = sand.u32 %s29, 1
        %s222 = smul.addr %s221, 1024
        %s223 = scalar_lea.vmem [#allocation2], %s222
        %p224 = pneg %p42
        %p225 = pneg %p39
        %p226 = pneg %p63
        %p227 = pneg %p60
        %s228 = sand.u32 %s21, 1
        %s229 = scalar_lea.sflag [#allocation3], %s228
        %s230 = sand.u32 %s76, 1
        %s231 = smul.addr %s230, 8
        %s232 = scalar_lea.vmem [#allocation7], %s231
        %p233 = pneg %p89
        %p234 = pneg %p86
        %p235 = pneg %p115
        %p236 = pneg %p112
        %s237 = sand.u32 %s102, 1
        %s238 = scalar_lea.sflag [#allocation4], %s237
        %s239 = sand.u32 %s102, 1
        %s240 = smul.addr %s239, 8
        %s241 = scalar_lea.vmem [#allocation8], %s240
        %s242 = smul.u32 128, %s21
        %s243 = smul.u32 8, %s21
        %s244 = smul.u32 8, %s21
        %v245 = vld [vmem:[#allocation5] sm:$0xff]
        %v246 = vld [vmem:[%s198] sm:$0xff]
        %v247 = vld [vmem:[%s198 + $0x8] sm:$0xff]
        %v248 = vld [vmem:[%s198 + $0x10] sm:$0xff]
        %v249 = vld [vmem:[%s198 + $0x18] sm:$0xff]
        %v250 = vld [vmem:[%s198 + $0x20] sm:$0xff]
        %v251 = vld [vmem:[%s198 + $0x28] sm:$0xff]
        %v252 = vld [vmem:[%s198 + $0x30] sm:$0xff]
        %v253 = vld [vmem:[%s198 + $0x38] sm:$0xff]
        %v254 = vld [vmem:[%s198 + $0x40] sm:$0xff]
        %v255 = vld [vmem:[%s198 + $0x48] sm:$0xff]
        %v256 = vld [vmem:[%s198 + $0x50] sm:$0xff]
        %v257 = vld [vmem:[%s198 + $0x58] sm:$0xff]
        %v258 = vld [vmem:[%s198 + $0x60] sm:$0xff]
        %v259 = vld [vmem:[%s198 + $0x68] sm:$0xff]
        %v260 = vld [vmem:[%s198 + $0x70] sm:$0xff]
        %v261 = vld [vmem:[%s198 + $0x78] sm:$0xff]
        %v262 = vld [vmem:[%s198 + $0x80] sm:$0xff]
        %v263 = vld [vmem:[%s198 + $0x88] sm:$0xff]
        %v264 = vld [vmem:[%s198 + $0x90] sm:$0xff]
        %v265 = vld [vmem:[%s198 + $0x98] sm:$0xff]
        %v266 = vld [vmem:[%s198 + $0xa0] sm:$0xff]
        %v267 = vld [vmem:[%s198 + $0xa8] sm:$0xff]
        %v268 = vld [vmem:[%s198 + $0xb0] sm:$0xff]
        %v269 = vld [vmem:[%s198 + $0xb8] sm:$0xff]
        %v270 = vld [vmem:[%s198 + $0xc0] sm:$0xff]
        %v271 = vld [vmem:[%s198 + $0xc8] sm:$0xff]
        %v272 = vld [vmem:[%s198 + $0xd0] sm:$0xff]
        %v273 = vld [vmem:[%s198 + $0xd8] sm:$0xff]
        %v274 = vld [vmem:[%s198 + $0xe0] sm:$0xff]
        %v275 = vld [vmem:[%s198 + $0xe8] sm:$0xff]
        %v276 = vld [vmem:[%s198 + $0xf0] sm:$0xff]
        %v277 = vld [vmem:[%s198 + $0xf8] sm:$0xff]
        %v278 = vld [vmem:[%s198 + $0x100] sm:$0xff]
        %v279 = vld [vmem:[%s198 + $0x108] sm:$0xff]
        %v280 = vld [vmem:[%s198 + $0x110] sm:$0xff]
        %v281 = vld [vmem:[%s198 + $0x118] sm:$0xff]
        %v282 = vld [vmem:[%s198 + $0x120] sm:$0xff]
        %v283 = vld [vmem:[%s198 + $0x128] sm:$0xff]
        %v284 = vld [vmem:[%s198 + $0x130] sm:$0xff]
        %v285 = vld [vmem:[%s198 + $0x138] sm:$0xff]
        %v286 = vld [vmem:[%s198 + $0x140] sm:$0xff]
        %v287 = vld [vmem:[%s198 + $0x148] sm:$0xff]
        %v288 = vld [vmem:[%s198 + $0x150] sm:$0xff]
        %v289 = vld [vmem:[%s198 + $0x158] sm:$0xff]
        %v290 = vld [vmem:[%s198 + $0x160] sm:$0xff]
        %v291 = vld [vmem:[%s198 + $0x168] sm:$0xff]
        %v292 = vld [vmem:[%s198 + $0x170] sm:$0xff]
        %v293 = vld [vmem:[%s198 + $0x178] sm:$0xff]
        %v294 = vld [vmem:[%s198 + $0x180] sm:$0xff]
        %v295 = vld [vmem:[%s198 + $0x188] sm:$0xff]
        %v296 = vld [vmem:[%s198 + $0x190] sm:$0xff]
        %v297 = vld [vmem:[%s198 + $0x198] sm:$0xff]
        %v298 = vld [vmem:[%s198 + $0x1a0] sm:$0xff]
        %v299 = vld [vmem:[%s198 + $0x1a8] sm:$0xff]
        %v300 = vld [vmem:[%s198 + $0x1b0] sm:$0xff]
        %v301 = vld [vmem:[%s198 + $0x1b8] sm:$0xff]
        %v302 = vld [vmem:[%s198 + $0x1c0] sm:$0xff]
        %v303 = vld [vmem:[%s198 + $0x1c8] sm:$0xff]
        %v304 = vld [vmem:[%s198 + $0x1d0] sm:$0xff]
        %v305 = vld [vmem:[%s198 + $0x1d8] sm:$0xff]
        %v306 = vld [vmem:[%s198 + $0x1e0] sm:$0xff]
        %v307 = vld [vmem:[%s198 + $0x1e8] sm:$0xff]
        %v308 = vld [vmem:[%s198 + $0x1f0] sm:$0xff]
        %v309 = vld [vmem:[%s198 + $0x1f8] sm:$0xff]
        %v310 = vld [vmem:[%s198 + $0x200] sm:$0xff]
        %v311 = vld [vmem:[%s198 + $0x208] sm:$0xff]
        %v312 = vld [vmem:[%s198 + $0x210] sm:$0xff]
        %v313 = vld [vmem:[%s198 + $0x218] sm:$0xff]
        %v314 = vld [vmem:[%s198 + $0x220] sm:$0xff]
        %v315 = vld [vmem:[%s198 + $0x228] sm:$0xff]
        %v316 = vld [vmem:[%s198 + $0x230] sm:$0xff]
        %v317 = vld [vmem:[%s198 + $0x238] sm:$0xff]
        %v318 = vld [vmem:[%s198 + $0x240] sm:$0xff]
        %v319 = vld [vmem:[%s198 + $0x248] sm:$0xff]
        %v320 = vld [vmem:[%s198 + $0x250] sm:$0xff]
        %v321 = vld [vmem:[%s198 + $0x258] sm:$0xff]
        %v322 = vld [vmem:[%s198 + $0x260] sm:$0xff]
        %v323 = vld [vmem:[%s198 + $0x268] sm:$0xff]
        %v324 = vld [vmem:[%s198 + $0x270] sm:$0xff]
        %v325 = vld [vmem:[%s198 + $0x278] sm:$0xff]
        %v326 = vld [vmem:[%s198 + $0x280] sm:$0xff]
        %v327 = vld [vmem:[%s198 + $0x288] sm:$0xff]
        %v328 = vld [vmem:[%s198 + $0x290] sm:$0xff]
        %v329 = vld [vmem:[%s198 + $0x298] sm:$0xff]
        %v330 = vld [vmem:[%s198 + $0x2a0] sm:$0xff]
        %v331 = vld [vmem:[%s198 + $0x2a8] sm:$0xff]
        %v332 = vld [vmem:[%s198 + $0x2b0] sm:$0xff]
        %v333 = vld [vmem:[%s198 + $0x2b8] sm:$0xff]
        %v334 = vld [vmem:[%s198 + $0x2c0] sm:$0xff]
        %v335 = vld [vmem:[%s198 + $0x2c8] sm:$0xff]
        %v336 = vld [vmem:[%s198 + $0x2d0] sm:$0xff]
        %v337 = vld [vmem:[%s198 + $0x2d8] sm:$0xff]
        %v338 = vld [vmem:[%s198 + $0x2e0] sm:$0xff]
        %v339 = vld [vmem:[%s198 + $0x2e8] sm:$0xff]
        %v340 = vld [vmem:[%s198 + $0x2f0] sm:$0xff]
        %v341 = vld [vmem:[%s198 + $0x2f8] sm:$0xff]
        %v342 = vld [vmem:[%s198 + $0x300] sm:$0xff]
        %v343 = vld [vmem:[%s198 + $0x308] sm:$0xff]
        %v344 = vld [vmem:[%s198 + $0x310] sm:$0xff]
        %v345 = vld [vmem:[%s198 + $0x318] sm:$0xff]
        %v346 = vld [vmem:[%s198 + $0x320] sm:$0xff]
        %v347 = vld [vmem:[%s198 + $0x328] sm:$0xff]
        %v348 = vld [vmem:[%s198 + $0x330] sm:$0xff]
        %v349 = vld [vmem:[%s198 + $0x338] sm:$0xff]
        %v350 = vld [vmem:[%s198 + $0x340] sm:$0xff]
        %v351 = vld [vmem:[%s198 + $0x348] sm:$0xff]
        %v352 = vld [vmem:[%s198 + $0x350] sm:$0xff]
        %v353 = vld [vmem:[%s198 + $0x358] sm:$0xff]
        %v354 = vld [vmem:[%s198 + $0x360] sm:$0xff]
        %v355 = vld [vmem:[%s198 + $0x368] sm:$0xff]
        %v356 = vld [vmem:[%s198 + $0x370] sm:$0xff]
        %v357 = vld [vmem:[%s198 + $0x378] sm:$0xff]
        %v358 = vld [vmem:[%s198 + $0x380] sm:$0xff]
        %v359 = vld [vmem:[%s198 + $0x388] sm:$0xff]
        %v360 = vld [vmem:[%s198 + $0x390] sm:$0xff]
        %v361 = vld [vmem:[%s198 + $0x398] sm:$0xff]
        %v362 = vld [vmem:[%s198 + $0x3a0] sm:$0xff]
        %v363 = vld [vmem:[%s198 + $0x3a8] sm:$0xff]
        %v364 = vld [vmem:[%s198 + $0x3b0] sm:$0xff]
        %v365 = vld [vmem:[%s198 + $0x3b8] sm:$0xff]
        %v366 = vld [vmem:[%s198 + $0x3c0] sm:$0xff]
        %v367 = vld [vmem:[%s198 + $0x3c8] sm:$0xff]
        %v368 = vld [vmem:[%s198 + $0x3d0] sm:$0xff]
        %v369 = vld [vmem:[%s198 + $0x3d8] sm:$0xff]
        %v370 = vld [vmem:[%s198 + $0x3e0] sm:$0xff]
        %v371 = vld [vmem:[%s198 + $0x3e8] sm:$0xff]
        %v372 = vld [vmem:[%s198 + $0x3f0] sm:$0xff]
        %v373 = vld [vmem:[%s198 + $0x3f8] sm:$0xff]
        %374 = vmatpush.xpose.msra.mxu0 %v261
        %375 = vmatpush.xpose.msra.mxu0 %v260
        %376 = vmatpush.xpose.msra.mxu0 %v259
        %377 = vmatpush.xpose.msra.mxu0 %v258
        %378 = vmatpush.xpose.msra.mxu0 %v257
        %379 = vmatpush.xpose.msra.mxu0 %v256
        %380 = vmatpush.xpose.msra.mxu0 %v255
        %381 = vmatpush.xpose.msra.mxu0 %v254
        %382 = vmatpush.xpose.msra.mxu0 %v253
        %383 = vmatpush.xpose.msra.mxu0 %v252
        %384 = vmatpush.xpose.msra.mxu0 %v251
        %385 = vmatpush.xpose.msra.mxu0 %v250
        %386 = vmatpush.xpose.msra.mxu0 %v249
        %387 = vmatpush.xpose.msra.mxu0 %v248
        %388 = vmatpush.xpose.msra.mxu0 %v247
        %389 = vmatpush.xpose.msra.mxu0 %v246
        %390 = vmatmul.f32.gmra.mxu0 %v245
        %v391 = vpop.f32.mrf.mxu0
        %v392 = vadd.f32 0.0, %v391
        %393 = vdwg.mxu0
        %394 = vmatpush.xpose.msra.mxu0 %v277
        %395 = vmatpush.xpose.msra.mxu0 %v276
        %396 = vmatpush.xpose.msra.mxu0 %v275
        %397 = vmatpush.xpose.msra.mxu0 %v274
        %398 = vmatpush.xpose.msra.mxu0 %v273
        %399 = vmatpush.xpose.msra.mxu0 %v272
        %400 = vmatpush.xpose.msra.mxu0 %v271
        %401 = vmatpush.xpose.msra.mxu0 %v270
        %402 = vmatpush.xpose.msra.mxu0 %v269
        %403 = vmatpush.xpose.msra.mxu0 %v268
        %404 = vmatpush.xpose.msra.mxu0 %v267
        %405 = vmatpush.xpose.msra.mxu0 %v266
        %406 = vmatpush.xpose.msra.mxu0 %v265
        %407 = vmatpush.xpose.msra.mxu0 %v264
        %408 = vmatpush.xpose.msra.mxu0 %v263
        %409 = vmatpush.xpose.msra.mxu0 %v262
        %410 = vmatmul.f32.gmra.mxu0 %v245
        %v411 = vpop.f32.mrf.mxu0
        %v412 = vadd.f32 0.0, %v411
        %413 = vdwg.mxu0
        %414 = vmatpush.xpose.msra.mxu0 %v293
        %415 = vmatpush.xpose.msra.mxu0 %v292
        %416 = vmatpush.xpose.msra.mxu0 %v291
        %417 = vmatpush.xpose.msra.mxu0 %v290
        %418 = vmatpush.xpose.msra.mxu0 %v289
        %419 = vmatpush.xpose.msra.mxu0 %v288
        %420 = vmatpush.xpose.msra.mxu0 %v287
        %421 = vmatpush.xpose.msra.mxu0 %v286
        %422 = vmatpush.xpose.msra.mxu0 %v285
        %423 = vmatpush.xpose.msra.mxu0 %v284
        %424 = vmatpush.xpose.msra.mxu0 %v283
        %425 = vmatpush.xpose.msra.mxu0 %v282
        %426 = vmatpush.xpose.msra.mxu0 %v281
        %427 = vmatpush.xpose.msra.mxu0 %v280
        %428 = vmatpush.xpose.msra.mxu0 %v279
        %429 = vmatpush.xpose.msra.mxu0 %v278
        %430 = vmatmul.f32.gmra.mxu0 %v245
        %v431 = vpop.f32.mrf.mxu0
        %v432 = vadd.f32 0.0, %v431
        %433 = vdwg.mxu0
        %434 = vmatpush.xpose.msra.mxu0 %v309
        %435 = vmatpush.xpose.msra.mxu0 %v308
        %436 = vmatpush.xpose.msra.mxu0 %v307
        %437 = vmatpush.xpose.msra.mxu0 %v306
        %438 = vmatpush.xpose.msra.mxu0 %v305
        %439 = vmatpush.xpose.msra.mxu0 %v304
        %440 = vmatpush.xpose.msra.mxu0 %v303
        %441 = vmatpush.xpose.msra.mxu0 %v302
        %442 = vmatpush.xpose.msra.mxu0 %v301
        %443 = vmatpush.xpose.msra.mxu0 %v300
        %444 = vmatpush.xpose.msra.mxu0 %v299
        %445 = vmatpush.xpose.msra.mxu0 %v298
        %446 = vmatpush.xpose.msra.mxu0 %v297
        %447 = vmatpush.xpose.msra.mxu0 %v296
        %448 = vmatpush.xpose.msra.mxu0 %v295
        %449 = vmatpush.xpose.msra.mxu0 %v294
        %450 = vmatmul.f32.gmra.mxu0 %v245
        %v451 = vpop.f32.mrf.mxu0
        %v452 = vadd.f32 0.0, %v451
        %453 = vdwg.mxu0
        %454 = vmatpush.xpose.msra.mxu0 %v325
        %455 = vmatpush.xpose.msra.mxu0 %v324
        %456 = vmatpush.xpose.msra.mxu0 %v323
        %457 = vmatpush.xpose.msra.mxu0 %v322
        %458 = vmatpush.xpose.msra.mxu0 %v321
        %459 = vmatpush.xpose.msra.mxu0 %v320
        %460 = vmatpush.xpose.msra.mxu0 %v319
        %461 = vmatpush.xpose.msra.mxu0 %v318
        %462 = vmatpush.xpose.msra.mxu0 %v317
        %463 = vmatpush.xpose.msra.mxu0 %v316
        %464 = vmatpush.xpose.msra.mxu0 %v315
        %465 = vmatpush.xpose.msra.mxu0 %v314
        %466 = vmatpush.xpose.msra.mxu0 %v313
        %467 = vmatpush.xpose.msra.mxu0 %v312
        %468 = vmatpush.xpose.msra.mxu0 %v311
        %469 = vmatpush.xpose.msra.mxu0 %v310
        %470 = vmatmul.f32.gmra.mxu0 %v245
        %v471 = vpop.f32.mrf.mxu0
        %v472 = vadd.f32 0.0, %v471
        %473 = vdwg.mxu0
        %474 = vmatpush.xpose.msra.mxu0 %v341
        %475 = vmatpush.xpose.msra.mxu0 %v340
        %476 = vmatpush.xpose.msra.mxu0 %v339
        %477 = vmatpush.xpose.msra.mxu0 %v338
        %478 = vmatpush.xpose.msra.mxu0 %v337
        %479 = vmatpush.xpose.msra.mxu0 %v336
        %480 = vmatpush.xpose.msra.mxu0 %v335
        %481 = vmatpush.xpose.msra.mxu0 %v334
        %482 = vmatpush.xpose.msra.mxu0 %v333
        %483 = vmatpush.xpose.msra.mxu0 %v332
        %484 = vmatpush.xpose.msra.mxu0 %v331
        %485 = vmatpush.xpose.msra.mxu0 %v330
        %486 = vmatpush.xpose.msra.mxu0 %v329
        %487 = vmatpush.xpose.msra.mxu0 %v328
        %488 = vmatpush.xpose.msra.mxu0 %v327
        %489 = vmatpush.xpose.msra.mxu0 %v326
        %490 = vmatmul.f32.gmra.mxu0 %v245
        %v491 = vpop.f32.mrf.mxu0
        %v492 = vadd.f32 0.0, %v491
        %493 = vdwg.mxu0
        %494 = vmatpush.xpose.msra.mxu0 %v357
        %495 = vmatpush.xpose.msra.mxu0 %v356
        %496 = vmatpush.xpose.msra.mxu0 %v355
        %497 = vmatpush.xpose.msra.mxu0 %v354
        %498 = vmatpush.xpose.msra.mxu0 %v353
        %499 = vmatpush.xpose.msra.mxu0 %v352
        %500 = vmatpush.xpose.msra.mxu0 %v351
        %501 = vmatpush.xpose.msra.mxu0 %v350
        %502 = vmatpush.xpose.msra.mxu0 %v349
        %503 = vmatpush.xpose.msra.mxu0 %v348
        %504 = vmatpush.xpose.msra.mxu0 %v347
        %505 = vmatpush.xpose.msra.mxu0 %v346
        %506 = vmatpush.xpose.msra.mxu0 %v345
        %507 = vmatpush.xpose.msra.mxu0 %v344
        %508 = vmatpush.xpose.msra.mxu0 %v343
        %509 = vmatpush.xpose.msra.mxu0 %v342
        %510 = vmatmul.f32.gmra.mxu0 %v245
        %v511 = vpop.f32.mrf.mxu0
        %v512 = vadd.f32 0.0, %v511
        %513 = vdwg.mxu0
        %514 = vmatpush.xpose.msra.mxu0 %v373
        %515 = vmatpush.xpose.msra.mxu0 %v372
        %516 = vmatpush.xpose.msra.mxu0 %v371
        %517 = vmatpush.xpose.msra.mxu0 %v370
        %518 = vmatpush.xpose.msra.mxu0 %v369
        %519 = vmatpush.xpose.msra.mxu0 %v368
        %520 = vmatpush.xpose.msra.mxu0 %v367
        %521 = vmatpush.xpose.msra.mxu0 %v366
        %522 = vmatpush.xpose.msra.mxu0 %v365
        %523 = vmatpush.xpose.msra.mxu0 %v364
        %524 = vmatpush.xpose.msra.mxu0 %v363
        %525 = vmatpush.xpose.msra.mxu0 %v362
        %526 = vmatpush.xpose.msra.mxu0 %v361
        %527 = vmatpush.xpose.msra.mxu0 %v360
        %528 = vmatpush.xpose.msra.mxu0 %v359
        %529 = vmatpush.xpose.msra.mxu0 %v358
        %530 = vmatmul.f32.gmra.mxu0 %v245
        %v531 = vpop.f32.mrf.mxu0
        %v532 = vadd.f32 0.0, %v531
        %533 = vdwg.mxu0
        %v534 = vld [vmem:[%s213] sm:$0xff]
        %v536 = vperm.slane %v534, 0
        %v537 = vperm.slane %v534, 1
        %v538 = vperm.slane %v534, 2
        %v539 = vperm.slane %v534, 3
        %v540 = vperm.slane %v534, 4
        %v541 = vperm.slane %v534, 5
        %v542 = vperm.slane %v534, 6
        %v543 = vperm.slane %v534, 7
        %v552 = vadd.f32 %v392, %v536
        %v553 = vadd.f32 %v412, %v537
        %v554 = vadd.f32 %v432, %v538
        %v555 = vadd.f32 %v452, %v539
        %v556 = vadd.f32 %v472, %v540
        %v557 = vadd.f32 %v492, %v541
        %v558 = vadd.f32 %v512, %v542
        %v559 = vadd.f32 %v532, %v543
        %v568 = vrot.slane %v553, 7
        %v569 = vrot.slane %v554, 6
        %v570 = vrot.slane %v555, 5
        %v571 = vrot.slane %v556, 4
        %v572 = vrot.slane %v557, 3
        %v573 = vrot.slane %v558, 2
        %v574 = vrot.slane %v559, 1
        %vm575 = vcmask 1040384
        %v576 = vsel %vm575, %v552, %v568
        %vm577 = vcmask 1042434
        %v578 = vsel %vm577, %v569, %v570
        %vm579 = vcmask 1041408
        %v580 = vsel %vm579, %v576, %v578
        %vm581 = vcmask 1044484
        %v582 = vsel %vm581, %v571, %v572
        %vm583 = vcmask 1046534
        %v584 = vsel %vm583, %v573, %v574
        %vm585 = vcmask 1045508
        %v586 = vsel %vm585, %v582, %v584
        %vm587 = vcmask 1043456
        %v588 = vsel %vm587, %v580, %v586
        %590 = vst [vmem:[%s241] sm:$0xff] %v588
        %s591 = sand.u32 %s102, 1
        %s592 = scalar_lea.sflag [#allocation4], %s591
        %s593 = sand.u32 %s102, 1
        %s594 = smul.addr %s593, 8
        %s595 = scalar_lea.vmem [#allocation8], %s594
        // Predicated region
        $region45: #{tpu_custom_call.1} parent=31 // pred_check
          %p596 = pneg %p112
        $region46: #{tpu_custom_call.1} parent=31 // pred_check_branch
          %598 = sbr.rel (%p596) target = $region48
        $region47: #{tpu_custom_call.1} parent=31 // pred_region
          %s599 = smul.u32 8, %s21
          %601 = vsyncadd %s592, 0
          %s602 = scalar_lea.hbm %s3, %s599
          %s604 = sshll.u32 %s595, 4
          %s605 = int_to_ptr.vmem [resolvable:$true] %s604
          %s606 = sshll.u32 %s602, 4
          %s607 = int_to_ptr.hbm [resolvable:$true] %s606
          %609 = dma.vmem_to_hbm [thread:$0]  %s605, 128, %s607, %s592
        $region48: #{tpu_custom_call.1} parent=31 // pred_fallthru
          _
      $region32: #{tpu_custom_call.1} parent=5 // pred_fallthru
        _
      %p610 = scmp.le.s32.totalorder 2, %s16
      // Predicated region
      $region49: #{tpu_custom_call.1} parent=5 // pred_check
        %p611 = pneg %p610
      $region50: #{tpu_custom_call.1} parent=5 // pred_check_branch
        %613 = sbr.rel (%p611) target = $region52
      $region51: #{tpu_custom_call.1} parent=5 // pred_region
        %s614 = ssub.s32 %s16, 2
        // Predicated region
        $region53: #{tpu_custom_call.1} parent=51 // pred_check
          %p615 = pneg %p118
        $region54: #{tpu_custom_call.1} parent=51 // pred_check_branch
          %617 = sbr.rel (%p615) target = $region56
        $region55: #{tpu_custom_call.1} parent=51 // pred_region
          %s618 = sand.u32 %s103, 1
          %s619 = scalar_lea.sflag [#allocation4], %s618
          %s620 = sand.u32 %s103, 1
          %s621 = smul.addr %s620, 8
          %s622 = scalar_lea.vmem [#allocation8], %s621
          %624 = dma.done %s619, 128
        $region56: #{tpu_custom_call.1} parent=51 // pred_fallthru
          _
      $region52: #{tpu_custom_call.1} parent=5 // pred_fallthru
        _
    $region6: #{tpu_custom_call.1} parent=1 // loop_footer
      %s20 = sadd.s32 1, %s16
    $region7: #{tpu_custom_call.1} parent=1 // loop_footer_branch
      %15 = sbr.rel target = $region3
    $region8: #{tpu_custom_call.1} parent=1 // loop_exit
      _
    %625 = vsyncpa [#allocation3], 1
    %s626 = scalar_lea.sflag [#allocation3], 1
    %627 = vsyncpa %s626, 1
    %628 = vsyncpa [#allocation6], 1
    %629 = vsyncpa [#allocation4], 1
    %s630 = scalar_lea.sflag [#allocation4], 1
    %631 = vsyncpa %s630, 1

</llo_original>
